<compile_context>
chip_gen: v6e
topology: v6e:2x2x1
jax: 0.10.0
libtpu: 0.0.40
codegen_flags: <defaults>
</compile_context>

<pallas_src>
import functools

import jax
import jax.numpy as jnp
from jax import lax
from jax.experimental import pallas as pl
from jax.experimental.pallas import tpu as pltpu


def _round_up(x, m):
    return ((x + m - 1) // m) * m


def _num_tensorcores():
    """Best-effort TensorCore-per-chip query (defensive; defaults to 1)."""
    try:
        info = pltpu.get_tpu_info()
        for attr in ("num_cores", "tensorcore_count", "num_tensorcores", "core_count"):
            v = getattr(info, attr, None)
            if isinstance(v, int) and v > 0:
                return v
    except Exception:
        pass
    try:
        kind = jax.devices()[0].device_kind.lower()
        if "v7" in kind:
            return 2  # v7x: 2 TensorCores per chip
    except Exception:
        pass
    return 1


def _choose_block_cols(n_pad, max_cols, num_cores):
    """Pick the lane-tile width bc.

    bc is a multiple of 128 that divides n_pad (no partial blocks, no wasted
    zero columns), capped at max_cols.  On single-TC chips we simply take the
    largest such tile (fewest ~0.35us grid steps).  On multi-TC chips (v7x)
    we additionally prefer a tile leaving >=4 steps per core so the grid can
    be sharded across cores and each core still pipelines DMA vs compute,
    as long as the tile stays lane-fat (>=1024 lanes).
    """
    n_tiles = n_pad // 128
    max_t = max(1, max_cols // 128)
    divisors = [t for t in range(1, n_tiles + 1) if n_tiles % t == 0 and t <= max_t]
    best = max(divisors)
    if num_cores > 1:
        min_steps = 4 * num_cores
        preferred = [t for t in divisors
                     if n_tiles // t >= min_steps and t * 128 >= 1024]
        if preferred:
            best = max(preferred)
        else:
            split = [t for t in divisors if n_tiles // t >= num_cores]
            if split:
                best = max(split)
    return best * 128


def _vnet_kernel(x_ref, w1t_ref, b1_ref, w2t_ref, b2_ref, w3_ref, b3_ref, o_ref):
    # x_ref: (bc, S) f32 -- contiguous row-major tile straight from HBM.
    x = x_ref[...]

    # First layer with a transposed contraction: (E,S) . (bc,S)^T -> (E, bc).
    # The orientation change happens on-chip (MXU transposed feed / XLU),
    # keeping every activation vreg lane-dense.
    h1 = lax.dot_general(
        w1t_ref[...], x,
        dimension_numbers=(((1,), (1,)), ((), ())),
        preferred_element_type=jnp.float32,
    ) + b1_ref[...]
    h1 = jnp.maximum(h1, 0.0)                      # (E, bc)

    h2 = jnp.dot(w2t_ref[...], h1, preferred_element_type=jnp.float32) + b2_ref[...]
    h2 = jnp.maximum(h2, 0.0)                      # (E, bc)

    # Final width-1 layer: VPU multiply + XLU sublane reduce instead of an
    # N=1 MXU matmul; the output stays a lane-dense (1, bc) row.
    v = jnp.sum(h2 * w3_ref[...], axis=0, keepdims=True) + b3_ref[0]
    o_ref[...] = v.astype(o_ref.dtype)


@functools.partial(jax.jit, static_argnames=("block_cols",))
def v_net_forward(states, params, block_cols=4096):
    """Pallas forward pass of V_Net.

    states: (..., state_dim) float32
    params: dict with w1 (S,E), b1 (1,E), w2 (E,E), b2 (1,E), w3 (E,1), b3 (1,1)
    returns: (..., 1) float32
    """
    w1, b1 = params["w1"], params["b1"]
    w2, b2 = params["w2"], params["b2"]
    w3, b3 = params["w3"], params["b3"]

    state_dim = states.shape[-1]
    embed_dim = w1.shape[1]
    lead_shape = states.shape[:-1]

    x = states.reshape(-1, state_dim).astype(jnp.float32)   # row-major, no relayout
    n = x.shape[0]

    # Pad rows only up to the 128-lane granule (only touches HBM for ragged N).
    n_pad = _round_up(max(n, 1), 128)
    if n_pad != n:
        x = jnp.pad(x, ((0, n_pad - n), (0, 0)))

    num_cores = _num_tensorcores()
    bc = _choose_block_cols(n_pad, block_cols, num_cores)
    grid = (n_pad // bc,)

    # Tiny parameter relayouts (a few KiB at most).
    w1t = w1.T                                     # (E, S)
    w2t = w2.T                                     # (E, E)
    b1c = b1.reshape(embed_dim, 1)
    b2c = b2.reshape(embed_dim, 1)
    w3c = w3.reshape(embed_dim, 1)
    b3s = b3.reshape(1)                            # SMEM scalar

    flops = 2 * n_pad * (state_dim * embed_dim + embed_dim * embed_dim + embed_dim)
    bytes_accessed = (
        n_pad * state_dim * 4 + n_pad * 4
        + (state_dim * embed_dim + embed_dim * embed_dim + 2 * embed_dim + 1) * 4
    )

    out_row = pl.pallas_call(
        _vnet_kernel,
        out_shape=jax.ShapeDtypeStruct((1, n_pad), jnp.float32),
        grid_spec=pltpu.PrefetchScalarGridSpec(
            num_scalar_prefetch=0,
            grid=grid,
            in_specs=[
                # activations: contiguous row-major tiles over the batch axis
                pl.BlockSpec((bc, state_dim), lambda i: (i, 0)),
                # parameters: full-array blocks, resident across the grid
                pl.BlockSpec((embed_dim, state_dim), lambda i: (0, 0)),
                pl.BlockSpec((embed_dim, 1), lambda i: (0, 0)),
                pl.BlockSpec((embed_dim, embed_dim), lambda i: (0, 0)),
                pl.BlockSpec((embed_dim, 1), lambda i: (0, 0)),
                pl.BlockSpec((embed_dim, 1), lambda i: (0, 0)),
                # final bias as a scalar in SMEM (avoids a padded VMEM tile)
                pl.BlockSpec(memory_space=pltpu.MemorySpace.SMEM),
            ],
            out_specs=pl.BlockSpec((1, bc), lambda i: (0, i)),
        ),
        compiler_params=pltpu.CompilerParams(
            dimension_semantics=("parallel",),
        ),
        cost_estimate=pl.CostEstimate(
            flops=flops, transcendentals=0, bytes_accessed=bytes_accessed
        ),
    )(x, w1t, b1c, w2t, b2c, w3c, b3s)

    return out_row[0, :n].reshape(*lead_shape, 1)


def init_params(key, state_dim, embed_dim):
    """Deterministic synthetic init (shapes match nn.Linear layers of V_Net)."""
    k1, k2, k3, k4, k5, k6 = jax.random.split(key, 6)
    scale1 = 1.0 / jnp.sqrt(state_dim)
    scale2 = 1.0 / jnp.sqrt(embed_dim)
    return {
        # stored as (in, out) = transpose of PyTorch's (out, in)
        "w1": jax.random.uniform(k1, (state_dim, embed_dim), jnp.float32, -scale1, scale1),
        "b1": jax.random.uniform(k2, (1, embed_dim), jnp.float32, -scale1, scale1),
        "w2": jax.random.uniform(k3, (embed_dim, embed_dim), jnp.float32, -scale2, scale2),
        "b2": jax.random.uniform(k4, (1, embed_dim), jnp.float32, -scale2, scale2),
        "w3": jax.random.uniform(k5, (embed_dim, 1), jnp.float32, -scale2, scale2),
        "b3": jax.random.uniform(k6, (1, 1), jnp.float32, -scale2, scale2),
    }


def v_net_reference(states, params):
    """Pure-JAX reference of the same forward pass."""
    h1 = jnp.maximum(states @ params["w1"] + params["b1"][0], 0.0)
    h2 = jnp.maximum(h1 @ params["w2"] + params["b2"][0], 0.0)
    return h2 @ params["w3"] + params["b3"][0]


if __name__ == "__main__":
    # QMIX-style shapes: state_dim = mixing_embed_dim = 32.
    state_dim, embed_dim = 32, 32

    key = jax.random.PRNGKey(0)
    k_states, k_params, k_ragged, k_big = jax.random.split(key, 4)
    params = init_params(k_params, state_dim, embed_dim)

    # Case 1: batch*seq = 256 rows -> one (or two, on v7x) lane-dense tiles.
    states = jax.random.normal(k_states, (4, 64, state_dim), dtype=jnp.float32)
    v = jax.block_until_ready(v_net_forward(states, params))
    assert v.shape == (4, 64, 1), v.shape
    v_ref = v_net_reference(states, params)
    assert jnp.allclose(v, v_ref, atol=1e-4, rtol=1e-4), "mismatch vs reference (case 1)"

    # Case 2: ragged row count (3*37 = 111), handled by 128-row pad + slice.
    states2 = jax.random.normal(k_ragged, (3, 37, state_dim), dtype=jnp.float32)
    v2 = jax.block_until_ready(v_net_forward(states2, params))
    assert v2.shape == (3, 37, 1), v2.shape
    v2_ref = v_net_reference(states2, params)
    assert jnp.allclose(v2, v2_ref, atol=1e-4, rtol=1e-4), "mismatch vs reference (case 2)"

    # Case 3: larger batch exercising the big-tile / multi-step grid path.
    states3 = jax.random.normal(k_big, (16, 256, state_dim), dtype=jnp.float32)
    v3 = jax.block_until_ready(v_net_forward(states3, params))
    assert v3.shape == (16, 256, 1), v3.shape
    v3_ref = v_net_reference(states3, params)
    assert jnp.allclose(v3, v3_ref, atol=1e-4, rtol=1e-4), "mismatch vs reference (case 3)"

    print("KERNEL_OK")
</pallas_src>

<mosaic_0001>
module attributes {stable_mosaic.version = 11 : i64} {
  func.func @_vnet_kernel(%arg0: i32, %arg1: memref<256x32xf32, #tpu.memory_space<vmem>>, %arg2: memref<32x32xf32, #tpu.memory_space<vmem>>, %arg3: memref<32x1xf32, #tpu.memory_space<vmem>>, %arg4: memref<32x32xf32, #tpu.memory_space<vmem>>, %arg5: memref<32x1xf32, #tpu.memory_space<vmem>>, %arg6: memref<32x1xf32, #tpu.memory_space<vmem>>, %arg7: memref<1xf32, #tpu.memory_space<smem>>, %arg8: memref<1x256xf32, #tpu.memory_space<vmem>>) attributes {dimension_semantics = [#tpu.dimension_semantics<parallel>], iteration_bounds = array<i64: 1>, scalar_prefetch = 0 : i64, scratch_operands = 0 : i64, tpu.core_type = #tpu.core_type<tc>, window_params = [{transform_indices = @transform_0, window_bounds = array<i64: 256, 32>}, {pipeline_mode = #tpu.pipeline_mode<synchronous>, transform_indices = @transform_1, window_bounds = array<i64: 32, 32>}, {pipeline_mode = #tpu.pipeline_mode<synchronous>, transform_indices = @transform_2, window_bounds = array<i64: 32, 1>}, {pipeline_mode = #tpu.pipeline_mode<synchronous>, transform_indices = @transform_3, window_bounds = array<i64: 32, 32>}, {pipeline_mode = #tpu.pipeline_mode<synchronous>, transform_indices = @transform_4, window_bounds = array<i64: 32, 1>}, {pipeline_mode = #tpu.pipeline_mode<synchronous>, transform_indices = @transform_5, window_bounds = array<i64: 32, 1>}, {transform_indices = @transform_6, window_bounds = array<i64: 1>}, {transform_indices = @transform_7, window_bounds = array<i64: 1, 256>}]} {
    %c0 = arith.constant 0 : index
    %c0_0 = arith.constant 0 : index
    %0 = vector.load %arg1[%c0, %c0_0] : memref<256x32xf32, #tpu.memory_space<vmem>>, vector<256x32xf32>
    %c0_1 = arith.constant 0 : index
    %c0_2 = arith.constant 0 : index
    %1 = vector.load %arg2[%c0_1, %c0_2] : memref<32x32xf32, #tpu.memory_space<vmem>>, vector<32x32xf32>
    %cst = arith.constant dense<0.000000e+00> : vector<32x256xf32>
    %2 = tpu.matmul %1, %0, %cst {dimension_numbers = #tpu.dot_dimension_numbers<[1], [1], [0], [0], [0, 0, 1, 0], [], []>} : vector<32x32xf32>, vector<256x32xf32>, vector<32x256xf32> -> vector<32x256xf32>
    %c0_3 = arith.constant 0 : index
    %c0_4 = arith.constant 0 : index
    %3 = vector.load %arg3[%c0_3, %c0_4] : memref<32x1xf32, #tpu.memory_space<vmem>>, vector<32x1xf32>
    %4 = vector.broadcast %3 : vector<32x1xf32> to vector<32x256xf32>
    %5 = arith.addf %2, %4 : vector<32x256xf32>
    %cst_5 = arith.constant 0.000000e+00 : f32
    %6 = vector.broadcast %cst_5 : f32 to vector<32x256xf32>
    %7 = arith.maximumf %5, %6 : vector<32x256xf32>
    %c0_6 = arith.constant 0 : index
    %c0_7 = arith.constant 0 : index
    %8 = vector.load %arg4[%c0_6, %c0_7] : memref<32x32xf32, #tpu.memory_space<vmem>>, vector<32x32xf32>
    %cst_8 = arith.constant dense<0.000000e+00> : vector<32x256xf32>
    %9 = tpu.matmul %8, %7, %cst_8 {dimension_numbers = #tpu.dot_dimension_numbers<[1], [0], [0], [1], [0, 0, 1, 1], [], []>} : vector<32x32xf32>, vector<32x256xf32>, vector<32x256xf32> -> vector<32x256xf32>
    %c0_9 = arith.constant 0 : index
    %c0_10 = arith.constant 0 : index
    %10 = vector.load %arg5[%c0_9, %c0_10] : memref<32x1xf32, #tpu.memory_space<vmem>>, vector<32x1xf32>
    %11 = vector.broadcast %10 : vector<32x1xf32> to vector<32x256xf32>
    %12 = arith.addf %9, %11 : vector<32x256xf32>
    %cst_11 = arith.constant 0.000000e+00 : f32
    %13 = vector.broadcast %cst_11 : f32 to vector<32x256xf32>
    %14 = arith.maximumf %12, %13 : vector<32x256xf32>
    %c0_12 = arith.constant 0 : index
    %c0_13 = arith.constant 0 : index
    %15 = vector.load %arg6[%c0_12, %c0_13] : memref<32x1xf32, #tpu.memory_space<vmem>>, vector<32x1xf32>
    %16 = vector.broadcast %15 : vector<32x1xf32> to vector<32x256xf32>
    %17 = arith.mulf %14, %16 : vector<32x256xf32>
    %cst_14 = arith.constant dense<0.000000e+00> : vector<256xf32>
    %18 = vector.multi_reduction <add>, %17, %cst_14 [0] : vector<32x256xf32> to vector<256xf32>
    %19 = vector.shape_cast %18 : vector<256xf32> to vector<1x256xf32>
    %c0_15 = arith.constant 0 : index
    %20 = memref.load %arg7[%c0_15] : memref<1xf32, #tpu.memory_space<smem>>
    %21 = vector.broadcast %20 : f32 to vector<1x256xf32>
    %22 = arith.addf %19, %21 : vector<1x256xf32>
    %c0_16 = arith.constant 0 : index
    %c0_17 = arith.constant 0 : index
    %23 = vector.load %arg8[%c0_16, %c0_17] : memref<1x256xf32, #tpu.memory_space<vmem>>, vector<1x256xf32>
    tpu.vector_store %arg8[%c0_16, %c0_17], %22 {strides = array<i32>} : memref<1x256xf32, #tpu.memory_space<vmem>>, vector<1x256xf32>,
    return
  }
  func.func @transform_0(%arg0: i32) -> (i32, i32) {
    %c0_i32 = arith.constant 0 : i32
    %c0_i32_0 = arith.constant 0 : i32
    return %arg0, %c0_i32 : i32, i32
  }
  func.func @transform_1(%arg0: i32) -> (i32, i32) {
    %c0_i32 = arith.constant 0 : i32
    %c0_i32_0 = arith.constant 0 : i32
    %c0_i32_1 = arith.constant 0 : i32
    return %c0_i32, %c0_i32_0 : i32, i32
  }
  func.func @transform_2(%arg0: i32) -> (i32, i32) {
    %c0_i32 = arith.constant 0 : i32
    %c0_i32_0 = arith.constant 0 : i32
    %c0_i32_1 = arith.constant 0 : i32
    return %c0_i32, %c0_i32_0 : i32, i32
  }
  func.func @transform_3(%arg0: i32) -> (i32, i32) {
    %c0_i32 = arith.constant 0 : i32
    %c0_i32_0 = arith.constant 0 : i32
    %c0_i32_1 = arith.constant 0 : i32
    return %c0_i32, %c0_i32_0 : i32, i32
  }
  func.func @transform_4(%arg0: i32) -> (i32, i32) {
    %c0_i32 = arith.constant 0 : i32
    %c0_i32_0 = arith.constant 0 : i32
    %c0_i32_1 = arith.constant 0 : i32
    return %c0_i32, %c0_i32_0 : i32, i32
  }
  func.func @transform_5(%arg0: i32) -> (i32, i32) {
    %c0_i32 = arith.constant 0 : i32
    %c0_i32_0 = arith.constant 0 : i32
    %c0_i32_1 = arith.constant 0 : i32
    return %c0_i32, %c0_i32_0 : i32, i32
  }
  func.func @transform_6(%arg0: i32) -> i32 {
    %c0_i32 = arith.constant 0 : i32
    %c0_i32_0 = arith.constant 0 : i32
    return %c0_i32 : i32
  }
  func.func @transform_7(%arg0: i32) -> (i32, i32) {
    %c0_i32 = arith.constant 0 : i32
    %c0_i32_0 = arith.constant 0 : i32
    return %c0_i32, %arg0 : i32, i32
  }
}

</mosaic_0001>

<llo_original>
// kernel: squeeze.1
$region0: #{squeeze.1}
  %s0 = inlined_call_operand.vmem [shape: f32[256], index: 0, kind: input, shape index: {}]
  %s1 = inlined_call_operand.hbm [shape: f32[4,64,1], index: 1, kind: output, shape index: {}]
  $region1: #{squeeze.1} parent=0
    #allocation0 [shape = 'u8[2048]{0}', space=vmem, size = 0x800, scoped, tag = 'operand span for operand 1']
    #allocation1 [shape = 's32[1]{0}', space=sflag, size = 0x4, scoped, tag = 'scoped memory for squeeze.1']
    #allocation2 [shape = 'u8[4096]{0}', space=vmem, size = 0x1000, scoped, tag = 'scoped mem for output reshape']
    #allocation3 [shape = 'u8[4096]{0}', space=vmem, size = 0x1000, scoped, tag = 'scoped mem for input reshape']
    %2 = vsyncpa [#allocation1], 0
    %s4 = sshll.u32 1, 2
    %s5 = ssub.s32 %s4, 1
    %v6 = vld [vmem:[%s0] sm:%s5]
    %7 = vst [vmem:[#allocation3] sm:%s5] %v6
    %v8 = vld [vmem:[#allocation3] sm:$0x3]
    %vm9 = vcmask 523264
    %10 = vst.msk [vmem:[#allocation2] ss:$2 sm:$0x3] %vm9, %v8
    %v11 = vld [vmem:[#allocation3] sm:$0x3]
    %12 = vrot.lane.b32.xlu0 %v11, 64
    %v13 = vpop.permute.xlu0 %12
    %vm14 = vcmask 523264
    %s15 = scalar_lea.vmem [#allocation2], 1
    %16 = vst.msk [vmem:[%s15] ss:$2 sm:$0x3] %vm14, %v13
    %s18 = sshll.u32 1, 4
    %s19 = ssub.s32 %s18, 1
    %v21 = vld [vmem:[#allocation2] sm:%s19]
    %s22 = sshll.u32 1, 4
    %s23 = ssub.s32 %s22, 1
    %24 = vst [vmem:[#allocation0] sm:%s23] %v21
    %s26 = ssub.s32 64, 64
    %27 = vsyncadd [#allocation1], %s26
    %s29 = sshll.u32 [#allocation0], 4
    %s30 = int_to_ptr.vmem [resolvable:$true] %s29
    %32 = dma.vmem_to_hbm [thread:$0]  %s30, 64, %s1, [#allocation1]
    %33 = dma.done [#allocation1], 64
    %34 = vsyncpa [#allocation1], 1

// kernel: v_net_forward.1
$region0: #{v_net_forward.1}
  #allocation0 [shape = 'u32[]', space=smem, size = 0x4, offset = 0x4, fixed_abs, tag = 'smem constant byte address 0x4 - core index']
  #allocation1 [shape = 'u32[144,128]{1,0:T(1,128)}', space=vmem, size = 0x12000, scoped, tag = 'internal scratch']
  #allocation2 [shape = 'f32[1]{0:T(128)S(6)}', space=smem, size = 0x200, scoped, tag = 'scoped memory for v_net_forward.1']
  %s0 = inlined_call_operand.vmem [shape: f32[256,32], index: 0, kind: input, shape index: {}]
  %s1 = inlined_call_operand.vmem [shape: f32[32,32], index: 1, kind: input, shape index: {}]
  %s2 = inlined_call_operand.vmem [shape: f32[32,1], index: 2, kind: input, shape index: {}]
  %s3 = inlined_call_operand.vmem [shape: f32[32,32], index: 3, kind: input, shape index: {}]
  %s4 = inlined_call_operand.vmem [shape: f32[32,1], index: 4, kind: input, shape index: {}]
  %s5 = inlined_call_operand.vmem [shape: f32[32,1], index: 5, kind: input, shape index: {}]
  %s6 = inlined_call_operand.<no memory space> [shape: f32[1], index: 6, kind: input, shape index: {}]
  %s7 = inlined_call_operand.vmem [shape: f32[1,256], index: 7, kind: output, shape index: {}]
  %s8 = sld [smem:[#allocation0]]
  $region38: #{v_net_forward.1} parent=0
    _
  %s10 = ssub.s32 1, %s8
  %s11 = scalar_select 0, %s10, %s8
  %12 = sst [smem:[#allocation2]] %s6
  // Predicated region
  $region2: #{v_net_forward.1} parent=0 // pred_check
    _
  $region3: #{v_net_forward.1} parent=0 // pred_check_branch
    %14 = sbr.rel (0) target = $region5
  $region4: #{v_net_forward.1} parent=0 // pred_region
    _
  $region5: #{v_net_forward.1} parent=0 // pred_fallthru
    _
  // Predicated region
  $region6: #{v_net_forward.1} parent=0 // pred_check
    _
  $region7: #{v_net_forward.1} parent=0 // pred_check_branch
    %16 = sbr.rel (0) target = $region9
  $region8: #{v_net_forward.1} parent=0 // pred_region
    _
  $region9: #{v_net_forward.1} parent=0 // pred_fallthru
    _
  // Predicated region
  $region10: #{v_net_forward.1} parent=0 // pred_check
    _
  $region11: #{v_net_forward.1} parent=0 // pred_check_branch
    %18 = sbr.rel (0) target = $region13
  $region12: #{v_net_forward.1} parent=0 // pred_region
    _
  $region13: #{v_net_forward.1} parent=0 // pred_fallthru
    _
  // Predicated region
  $region14: #{v_net_forward.1} parent=0 // pred_check
    _
  $region15: #{v_net_forward.1} parent=0 // pred_check_branch
    %20 = sbr.rel (0) target = $region17
  $region16: #{v_net_forward.1} parent=0 // pred_region
    _
  $region17: #{v_net_forward.1} parent=0 // pred_fallthru
    _
  // Predicated region
  $region18: #{v_net_forward.1} parent=0 // pred_check
    _
  $region19: #{v_net_forward.1} parent=0 // pred_check_branch
    %22 = sbr.rel (0) target = $region21
  $region20: #{v_net_forward.1} parent=0 // pred_region
    _
  $region21: #{v_net_forward.1} parent=0 // pred_fallthru
    _
  // Predicated region
  $region22: #{v_net_forward.1} parent=0 // pred_check
    _
  $region23: #{v_net_forward.1} parent=0 // pred_check_branch
    %24 = sbr.rel (0) target = $region25
  $region24: #{v_net_forward.1} parent=0 // pred_region
    _
  $region25: #{v_net_forward.1} parent=0 // pred_fallthru
    _
  // Predicated region
  $region26: #{v_net_forward.1} parent=0 // pred_check
    _
  $region27: #{v_net_forward.1} parent=0 // pred_check_branch
    %26 = sbr.rel (0) target = $region29
  $region28: #{v_net_forward.1} parent=0 // pred_region
    _
  $region29: #{v_net_forward.1} parent=0 // pred_fallthru
    _
  %v27 = vld [vmem:[%s0] sm:$0xff]
  %v28 = vld [vmem:[%s0 + $0x8] sm:$0xff]
  %v29 = vld [vmem:[%s0 + $0x10] sm:$0xff]
  %v30 = vld [vmem:[%s0 + $0x18] sm:$0xff]
  %v31 = vld [vmem:[%s0 + $0x20] sm:$0xff]
  %v32 = vld [vmem:[%s0 + $0x28] sm:$0xff]
  %v33 = vld [vmem:[%s0 + $0x30] sm:$0xff]
  %v34 = vld [vmem:[%s0 + $0x38] sm:$0xff]
  %v35 = vld [vmem:[%s0 + $0x40] sm:$0xff]
  %v36 = vld [vmem:[%s0 + $0x48] sm:$0xff]
  %v37 = vld [vmem:[%s0 + $0x50] sm:$0xff]
  %v38 = vld [vmem:[%s0 + $0x58] sm:$0xff]
  %v39 = vld [vmem:[%s0 + $0x60] sm:$0xff]
  %v40 = vld [vmem:[%s0 + $0x68] sm:$0xff]
  %v41 = vld [vmem:[%s0 + $0x70] sm:$0xff]
  %v42 = vld [vmem:[%s0 + $0x78] sm:$0xff]
  %v43 = vld [vmem:[%s0 + $0x80] sm:$0xff]
  %v44 = vld [vmem:[%s0 + $0x88] sm:$0xff]
  %v45 = vld [vmem:[%s0 + $0x90] sm:$0xff]
  %v46 = vld [vmem:[%s0 + $0x98] sm:$0xff]
  %v47 = vld [vmem:[%s0 + $0xa0] sm:$0xff]
  %v48 = vld [vmem:[%s0 + $0xa8] sm:$0xff]
  %v49 = vld [vmem:[%s0 + $0xb0] sm:$0xff]
  %v50 = vld [vmem:[%s0 + $0xb8] sm:$0xff]
  %v51 = vld [vmem:[%s0 + $0xc0] sm:$0xff]
  %v52 = vld [vmem:[%s0 + $0xc8] sm:$0xff]
  %v53 = vld [vmem:[%s0 + $0xd0] sm:$0xff]
  %v54 = vld [vmem:[%s0 + $0xd8] sm:$0xff]
  %v55 = vld [vmem:[%s0 + $0xe0] sm:$0xff]
  %v56 = vld [vmem:[%s0 + $0xe8] sm:$0xff]
  %v57 = vld [vmem:[%s0 + $0xf0] sm:$0xff]
  %v58 = vld [vmem:[%s0 + $0xf8] sm:$0xff]
  %v59 = vld [vmem:[%s1] sm:$0xff]
  %v60 = vld [vmem:[%s1 + $0x8] sm:$0xff]
  %v61 = vld [vmem:[%s1 + $0x10] sm:$0xff]
  %v62 = vld [vmem:[%s1 + $0x18] sm:$0xff]
  %v63 = vld [vmem:[%s2] sm:$0xff]
  %v64 = vld [vmem:[%s2 + $0x8] sm:$0xff]
  %v65 = vld [vmem:[%s2 + $0x10] sm:$0xff]
  %v66 = vld [vmem:[%s2 + $0x18] sm:$0xff]
  %68 = vset.pattern.permute.xlu0 0
  %69 = vperm.xlu0 %68, %v63
  %v70 = vpop.permute.xlu0 %69
  %73 = vset.pattern.permute.xlu0 0
  %74 = vperm.xlu0 %73, %v64
  %v75 = vpop.permute.xlu0 %74
  %78 = vset.pattern.permute.xlu0 0
  %79 = vperm.xlu0 %78, %v65
  %v80 = vpop.permute.xlu0 %79
  %83 = vset.pattern.permute.xlu0 0
  %84 = vperm.xlu0 %83, %v66
  %v85 = vpop.permute.xlu0 %84
  %vm87 = vcmask 261120
  %v89 = vsel %vm87, %v59, 0
  %v92 = vsel %vm87, %v60, 0
  %v95 = vsel %vm87, %v61, 0
  %v98 = vsel %vm87, %v62, 0
  %v101 = vsel %vm87, %v27, 0
  %v104 = vsel %vm87, %v28, 0
  %v107 = vsel %vm87, %v29, 0
  %v110 = vsel %vm87, %v30, 0
  %v113 = vsel %vm87, %v31, 0
  %v116 = vsel %vm87, %v32, 0
  %v119 = vsel %vm87, %v33, 0
  %v122 = vsel %vm87, %v34, 0
  %v125 = vsel %vm87, %v35, 0
  %v128 = vsel %vm87, %v36, 0
  %v131 = vsel %vm87, %v37, 0
  %v134 = vsel %vm87, %v38, 0
  %v137 = vsel %vm87, %v39, 0
  %v140 = vsel %vm87, %v40, 0
  %v143 = vsel %vm87, %v41, 0
  %v146 = vsel %vm87, %v42, 0
  %v149 = vsel %vm87, %v43, 0
  %v152 = vsel %vm87, %v44, 0
  %v155 = vsel %vm87, %v45, 0
  %v158 = vsel %vm87, %v46, 0
  %v161 = vsel %vm87, %v47, 0
  %v164 = vsel %vm87, %v48, 0
  %v167 = vsel %vm87, %v49, 0
  %v170 = vsel %vm87, %v50, 0
  %v173 = vsel %vm87, %v51, 0
  %v176 = vsel %vm87, %v52, 0
  %v179 = vsel %vm87, %v53, 0
  %v182 = vsel %vm87, %v54, 0
  %v185 = vsel %vm87, %v55, 0
  %v188 = vsel %vm87, %v56, 0
  %v191 = vsel %vm87, %v57, 0
  %v194 = vsel %vm87, %v58, 0
  %196 = vmatprep.subr.mxu0 0.0
  %197 = vmatpush1.xpose.msra.mxu0 %v146
  %198 = vmatprep.subr.mxu0 0.0
  %199 = vmatpush1.xpose.msra.mxu0 %v143
  %200 = vmatprep.subr.mxu0 0.0
  %201 = vmatpush1.xpose.msra.mxu0 %v140
  %202 = vmatprep.subr.mxu0 0.0
  %203 = vmatpush1.xpose.msra.mxu0 %v137
  %204 = vmatprep.subr.mxu0 0.0
  %205 = vmatpush1.xpose.msra.mxu0 %v134
  %206 = vmatprep.subr.mxu0 0.0
  %207 = vmatpush1.xpose.msra.mxu0 %v131
  %208 = vmatprep.subr.mxu0 0.0
  %209 = vmatpush1.xpose.msra.mxu0 %v128
  %210 = vmatprep.subr.mxu0 0.0
  %211 = vmatpush1.xpose.msra.mxu0 %v125
  %212 = vmatprep.subr.mxu0 0.0
  %213 = vmatpush1.xpose.msra.mxu0 %v122
  %214 = vmatprep.subr.mxu0 0.0
  %215 = vmatpush1.xpose.msra.mxu0 %v119
  %216 = vmatprep.subr.mxu0 0.0
  %217 = vmatpush1.xpose.msra.mxu0 %v116
  %218 = vmatprep.subr.mxu0 0.0
  %219 = vmatpush1.xpose.msra.mxu0 %v113
  %220 = vmatprep.subr.mxu0 0.0
  %221 = vmatpush1.xpose.msra.mxu0 %v110
  %222 = vmatprep.subr.mxu0 0.0
  %223 = vmatpush1.xpose.msra.mxu0 %v107
  %224 = vmatprep.subr.mxu0 0.0
  %225 = vmatpush1.xpose.msra.mxu0 %v104
  %226 = vmatprep.subr.mxu0 0.0
  %227 = vmatpush1.xpose.msra.mxu0 %v101
  %228 = vmatprep.subr.mxu0 0.0
  %229 = vmatpush2.xpose.msra.mxu0 %v194
  %230 = vmatprep.subr.mxu0 0.0
  %231 = vmatpush2.xpose.msra.mxu0 %v191
  %232 = vmatprep.subr.mxu0 0.0
  %233 = vmatpush2.xpose.msra.mxu0 %v188
  %234 = vmatprep.subr.mxu0 0.0
  %235 = vmatpush2.xpose.msra.mxu0 %v185
  %236 = vmatprep.subr.mxu0 0.0
  %237 = vmatpush2.xpose.msra.mxu0 %v182
  %238 = vmatprep.subr.mxu0 0.0
  %239 = vmatpush2.xpose.msra.mxu0 %v179
  %240 = vmatprep.subr.mxu0 0.0
  %241 = vmatpush2.xpose.msra.mxu0 %v176
  %242 = vmatprep.subr.mxu0 0.0
  %243 = vmatpush2.xpose.msra.mxu0 %v173
  %244 = vmatprep.subr.mxu0 0.0
  %245 = vmatpush2.xpose.msra.mxu0 %v170
  %246 = vmatprep.subr.mxu0 0.0
  %247 = vmatpush2.xpose.msra.mxu0 %v167
  %248 = vmatprep.subr.mxu0 0.0
  %249 = vmatpush2.xpose.msra.mxu0 %v164
  %250 = vmatprep.subr.mxu0 0.0
  %251 = vmatpush2.xpose.msra.mxu0 %v161
  %252 = vmatprep.subr.mxu0 0.0
  %253 = vmatpush2.xpose.msra.mxu0 %v158
  %254 = vmatprep.subr.mxu0 0.0
  %255 = vmatpush2.xpose.msra.mxu0 %v155
  %256 = vmatprep.subr.mxu0 0.0
  %257 = vmatpush2.xpose.msra.mxu0 %v152
  %258 = vmatprep.subr.mxu0 0.0
  %259 = vmatpush2.xpose.msra.mxu0 %v149
  %260 = vmatprep.mubr.f32.mxu0 0.0
  %261 = vmatmul.mubr.f32.gmra.mxu0 %v89
  %v262 = vpop.f32.mrf.mxu0
  %v263 = vadd.f32 %v70, %v262
  %v264 = vpop.f32.mrf.mxu0
  %v265 = vadd.f32 %v70, %v264
  %266 = vmatprep.mubr.f32.mxu0 0.0
  %267 = vmatmul.mubr.f32.gmra.mxu0 %v92
  %v268 = vpop.f32.mrf.mxu0
  %v269 = vadd.f32 %v75, %v268
  %v270 = vpop.f32.mrf.mxu0
  %v271 = vadd.f32 %v75, %v270
  %272 = vmatprep.mubr.f32.mxu0 0.0
  %273 = vmatmul.mubr.f32.gmra.mxu0 %v95
  %v274 = vpop.f32.mrf.mxu0
  %v275 = vadd.f32 %v80, %v274
  %v276 = vpop.f32.mrf.mxu0
  %v277 = vadd.f32 %v80, %v276
  %278 = vmatprep.mubr.f32.mxu0 0.0
  %279 = vmatmul.mubr.f32.gmra.mxu0 %v98
  %v280 = vpop.f32.mrf.mxu0
  %v281 = vadd.f32 %v85, %v280
  %v282 = vpop.f32.mrf.mxu0
  %v283 = vadd.f32 %v85, %v282
  %284 = vdwg.mxu0
  %v285 = vmax.f32 %v263, 0.0
  %v286 = vmax.f32 %v265, 0.0
  %v287 = vmax.f32 %v269, 0.0
  %v288 = vmax.f32 %v271, 0.0
  %v289 = vmax.f32 %v275, 0.0
  %v290 = vmax.f32 %v277, 0.0
  %v291 = vmax.f32 %v281, 0.0
  %v292 = vmax.f32 %v283, 0.0
  %v293 = vld [vmem:[%s3] sm:$0xff]
  %v294 = vld [vmem:[%s3 + $0x8] sm:$0xff]
  %v295 = vld [vmem:[%s3 + $0x10] sm:$0xff]
  %v296 = vld [vmem:[%s3 + $0x18] sm:$0xff]
  %v297 = vld [vmem:[%s4] sm:$0xff]
  %v298 = vld [vmem:[%s4 + $0x8] sm:$0xff]
  %v299 = vld [vmem:[%s4 + $0x10] sm:$0xff]
  %v300 = vld [vmem:[%s4 + $0x18] sm:$0xff]
  %302 = vset.pattern.permute.xlu0 0
  %303 = vperm.xlu0 %302, %v297
  %v304 = vpop.permute.xlu0 %303
  %307 = vset.pattern.permute.xlu0 0
  %308 = vperm.xlu0 %307, %v298
  %v309 = vpop.permute.xlu0 %308
  %312 = vset.pattern.permute.xlu0 0
  %313 = vperm.xlu0 %312, %v299
  %v314 = vpop.permute.xlu0 %313
  %317 = vset.pattern.permute.xlu0 0
  %318 = vperm.xlu0 %317, %v300
  %v319 = vpop.permute.xlu0 %318
  %v322 = vsel %vm87, %v293, 0
  %v325 = vsel %vm87, %v294, 0
  %v328 = vsel %vm87, %v295, 0
  %v331 = vsel %vm87, %v296, 0
  %333 = vmatprep.subr.mxu0 0.0
  %334 = vmatpush1.msra.mxu0 0.0
  %335 = vmatprep.subr.mxu0 0.0
  %336 = vmatpush1.msra.mxu0 0.0
  %337 = vmatprep.subr.mxu0 0.0
  %338 = vmatpush1.msra.mxu0 0.0
  %339 = vmatprep.subr.mxu0 0.0
  %340 = vmatpush1.msra.mxu0 0.0
  %341 = vmatprep.subr.mxu0 0.0
  %342 = vmatpush1.msra.mxu0 0.0
  %343 = vmatprep.subr.mxu0 0.0
  %344 = vmatpush1.msra.mxu0 0.0
  %345 = vmatprep.subr.mxu0 0.0
  %346 = vmatpush1.msra.mxu0 0.0
  %347 = vmatprep.subr.mxu0 0.0
  %348 = vmatpush1.msra.mxu0 0.0
  %349 = vmatprep.subr.mxu0 0.0
  %350 = vmatpush1.msra.mxu0 0.0
  %351 = vmatprep.subr.mxu0 0.0
  %352 = vmatpush1.msra.mxu0 0.0
  %353 = vmatprep.subr.mxu0 0.0
  %354 = vmatpush1.msra.mxu0 0.0
  %355 = vmatprep.subr.mxu0 0.0
  %356 = vmatpush1.msra.mxu0 0.0
  %357 = vmatprep.subr.mxu0 %v292
  %358 = vmatpush1.msra.mxu0 %v291
  %359 = vmatprep.subr.mxu0 %v290
  %360 = vmatpush1.msra.mxu0 %v289
  %361 = vmatprep.subr.mxu0 %v288
  %362 = vmatpush1.msra.mxu0 %v287
  %363 = vmatprep.subr.mxu0 %v286
  %364 = vmatpush1.msra.mxu0 %v285
  %365 = vmatprep.subr.mxu0 0.0
  %366 = vmatpush2.msra.mxu0 0.0
  %367 = vmatprep.subr.mxu0 0.0
  %368 = vmatpush2.msra.mxu0 0.0
  %369 = vmatprep.subr.mxu0 0.0
  %370 = vmatpush2.msra.mxu0 0.0
  %371 = vmatprep.subr.mxu0 0.0
  %372 = vmatpush2.msra.mxu0 0.0
  %373 = vmatprep.subr.mxu0 0.0
  %374 = vmatpush2.msra.mxu0 0.0
  %375 = vmatprep.subr.mxu0 0.0
  %376 = vmatpush2.msra.mxu0 0.0
  %377 = vmatprep.subr.mxu0 0.0
  %378 = vmatpush2.msra.mxu0 0.0
  %379 = vmatprep.subr.mxu0 0.0
  %380 = vmatpush2.msra.mxu0 0.0
  %381 = vmatprep.subr.mxu0 0.0
  %382 = vmatpush2.msra.mxu0 0.0
  %383 = vmatprep.subr.mxu0 0.0
  %384 = vmatpush2.msra.mxu0 0.0
  %385 = vmatprep.subr.mxu0 0.0
  %386 = vmatpush2.msra.mxu0 0.0
  %387 = vmatprep.subr.mxu0 0.0
  %388 = vmatpush2.msra.mxu0 0.0
  %389 = vmatprep.subr.mxu0 0.0
  %390 = vmatpush2.msra.mxu0 0.0
  %391 = vmatprep.subr.mxu0 0.0
  %392 = vmatpush2.msra.mxu0 0.0
  %393 = vmatprep.subr.mxu0 0.0
  %394 = vmatpush2.msra.mxu0 0.0
  %395 = vmatprep.subr.mxu0 0.0
  %396 = vmatpush2.msra.mxu0 0.0
  %397 = vmatprep.mubr.f32.mxu0 0.0
  %398 = vmatmul.mubr.f32.gmra.mxu0 %v322
  %v399 = vpop.f32.mrf.mxu0
  %v400 = vadd.f32 %v304, %v399
  %v401 = vpop.f32.mrf.mxu0
  %v402 = vadd.f32 %v304, %v401
  %403 = vmatprep.mubr.f32.mxu0 0.0
  %404 = vmatmul.mubr.f32.gmra.mxu0 %v325
  %v405 = vpop.f32.mrf.mxu0
  %v406 = vadd.f32 %v309, %v405
  %v407 = vpop.f32.mrf.mxu0
  %v408 = vadd.f32 %v309, %v407
  %409 = vmatprep.mubr.f32.mxu0 0.0
  %410 = vmatmul.mubr.f32.gmra.mxu0 %v328
  %v411 = vpop.f32.mrf.mxu0
  %v412 = vadd.f32 %v314, %v411
  %v413 = vpop.f32.mrf.mxu0
  %v414 = vadd.f32 %v314, %v413
  %415 = vmatprep.mubr.f32.mxu0 0.0
  %416 = vmatmul.mubr.f32.gmra.mxu0 %v331
  %v417 = vpop.f32.mrf.mxu0
  %v418 = vadd.f32 %v319, %v417
  %v419 = vpop.f32.mrf.mxu0
  %v420 = vadd.f32 %v319, %v419
  %421 = vdwg.mxu0
  %v422 = vmax.f32 %v400, 0.0
  %v423 = vmax.f32 %v402, 0.0
  %v424 = vmax.f32 %v406, 0.0
  %v425 = vmax.f32 %v408, 0.0
  %v426 = vmax.f32 %v412, 0.0
  %v427 = vmax.f32 %v414, 0.0
  %v428 = vmax.f32 %v418, 0.0
  %v429 = vmax.f32 %v420, 0.0
  %v430 = vld [vmem:[%s5] sm:$0xff]
  %v431 = vld [vmem:[%s5 + $0x8] sm:$0xff]
  %v432 = vld [vmem:[%s5 + $0x10] sm:$0xff]
  %v433 = vld [vmem:[%s5 + $0x18] sm:$0xff]
  %435 = vset.pattern.permute.xlu0 0
  %436 = vperm.xlu0 %435, %v430
  %v437 = vpop.permute.xlu0 %436
  %440 = vset.pattern.permute.xlu0 0
  %441 = vperm.xlu0 %440, %v431
  %v442 = vpop.permute.xlu0 %441
  %445 = vset.pattern.permute.xlu0 0
  %446 = vperm.xlu0 %445, %v432
  %v447 = vpop.permute.xlu0 %446
  %450 = vset.pattern.permute.xlu0 0
  %451 = vperm.xlu0 %450, %v433
  %v452 = vpop.permute.xlu0 %451
  %v454 = vmul.f32 %v422, %v437
  %v455 = vmul.f32 %v423, %v437
  %v456 = vmul.f32 %v424, %v442
  %v457 = vmul.f32 %v425, %v442
  %v458 = vmul.f32 %v426, %v447
  %v459 = vmul.f32 %v427, %v447
  %v460 = vmul.f32 %v428, %v452
  %v461 = vmul.f32 %v429, %v452
  %v462 = vadd.f32 %v454, %v456
  %v463 = vadd.f32 %v462, %v458
  %v464 = vadd.f32 %v463, %v460
  %v465 = vrot.slane %v464, 4
  %v466 = vadd.f32 %v464, %v465
  %v467 = vrot.slane %v466, 2
  %v468 = vadd.f32 %v466, %v467
  %v469 = vrot.slane %v468, 1
  %v470 = vadd.f32 %v468, %v469
  %v471 = vadd.f32 %v455, %v457
  %v472 = vadd.f32 %v471, %v459
  %v473 = vadd.f32 %v472, %v461
  %v474 = vrot.slane %v473, 4
  %v475 = vadd.f32 %v473, %v474
  %v476 = vrot.slane %v475, 2
  %v477 = vadd.f32 %v475, %v476
  %v478 = vrot.slane %v477, 1
  %v479 = vadd.f32 %v477, %v478
  %s480 = sld [smem:[#allocation2]]
  %v481 = vstv %s480
  %v482 = vadd.f32 %v470, %v481
  %v483 = vadd.f32 %v479, %v481
  %v486 = vcombine.low %v482, %v483
  %v488 = vunpack.c.l.s4 1966171168
  %v489 = vunpack.c.0.s8 %v488
  %v490 = vlaneseq
  %v491 = vshrl.u32 %v490, 7
  %v492 = vsub.s32 %v489, %v491
  %v493 = vrot.slane %v486, %v492
  %v495 = vunpack.c.l.s4 1966171168
  %v496 = vunpack.c.0.s8 %v495
  %v497 = vlaneseq
  %v498 = vshrl.u32 %v497, 7
  %v499 = vsub.s32 %v496, %v498
  %v500 = vrot.slane %v493, %v499
  %v502 = vlaneseq
  %vm503 = vcmp.ge.s32.totalorder %v502, 0
  %vm504 = vcmp.lt.s32.totalorder %v502, 256
  %vm505 = vmand %vm503, %vm504
  %506 = vst.msk [vmem:[%s7] sm:$0x3] %vm505, %v500
  // Predicated region
  $region30: #{v_net_forward.1} parent=0 // pred_check
    _
  $region31: #{v_net_forward.1} parent=0 // pred_check_branch
    %508 = sbr.rel (0) target = $region33
  $region32: #{v_net_forward.1} parent=0 // pred_region
    _
  $region33: #{v_net_forward.1} parent=0 // pred_fallthru
    _
  // Predicated region
  $region34: #{v_net_forward.1} parent=0 // pred_check
    _
  $region35: #{v_net_forward.1} parent=0 // pred_check_branch
    %510 = sbr.rel (0) target = $region37
  $region36: #{v_net_forward.1} parent=0 // pred_region
    _
  $region37: #{v_net_forward.1} parent=0 // pred_fallthru
    _

</llo_original>
